<compile_context>
chip_gen: v7x
topology: tpu7x:2x2x1
jax: 0.10.0
libtpu: 0.0.40
codegen_flags: <defaults>
</compile_context>

<pallas_src>
import jax
import jax.numpy as jnp
from jax import lax
from jax.experimental import pallas as pl
from jax.experimental.pallas import tpu as pltpu

HIDDEN = 32       # hidden_size (small test size; module default is 512)
VOCAB = 64        # output_size
LANE = 128


def _round_up(x, m):
    return ((x + m - 1) // m) * m


# ------------------------------- kernel --------------------------------------

def decoder_kernel(x_ref,        # (T, Hp)   embedding rows (gathered in wrapper)
                   h0_ref,       # (1, Hp)   initial hidden, f32 (pad lanes zero)
                   w_i_ref,      # (Hp, 3Hp) packed input gate weights  (r|z|n)
                   w_h_ref,      # (Hp, 3Hp) packed hidden gate weights (r|z|n)
                   b_i_ref,      # (1, 3Hp)  packed input biases, f32
                   b_h_ref,      # (1, 3Hp)  packed hidden biases, f32
                   w_out_ref,    # (Hp, Vp)  output projection (vocab padded)
                   b_out_ref,    # (1, Vp)   output bias, f32, -1e30 on pad lanes
                   logp_ref,     # out (T, Vp) f32 log-probs
                   hout_ref,     # out (1, Hp) f32 final hidden
                   gi_scr,       # scratch (T, 3Hp) f32: precomputed input-path gates
                   h_all_scr):   # scratch (T, Hp)  f32: per-step hidden states
    T = x_ref.shape[0]
    Hp = h0_ref.shape[1]

    # (1) Hoisted input transform: relu(emb) @ w_i for all T steps as one
    #     M=T MXU matmul (bf16-native when weights are bf16, f32 accumulate).
    x = jnp.maximum(x_ref[...], 0).astype(w_i_ref.dtype)
    gi_scr[...] = (jnp.dot(x, w_i_ref[...], preferred_element_type=jnp.float32)
                   + b_i_ref[...])

    # Hoist the recurrent weights/bias out of the serial loop (cast once).
    w_h = w_h_ref[...].astype(jnp.float32)
    b_h = b_h_ref[...]

    # (2) Serial recurrence: only the hidden-path matmul + gate math per step.
    #     Gate slices land on 128-lane boundaries because Hp % 128 == 0.
    def step(t, h):
        gi = gi_scr[pl.ds(t, 1), :]                                    # (1, 3Hp)
        gh = jnp.dot(h, w_h, preferred_element_type=jnp.float32) + b_h
        r = jax.nn.sigmoid(gi[:, 0:Hp] + gh[:, 0:Hp])
        z = jax.nn.sigmoid(gi[:, Hp:2 * Hp] + gh[:, Hp:2 * Hp])
        n = jnp.tanh(gi[:, 2 * Hp:3 * Hp] + r * gh[:, 2 * Hp:3 * Hp])
        h_new = (1.0 - z) * n + z * h
        h_all_scr[pl.ds(t, 1), :] = h_new
        return h_new

    h_final = lax.fori_loop(0, T, step, h0_ref[...], unroll=(T <= 16))
    hout_ref[...] = h_final          # written exactly once, after the loop

    # (3) Deferred output projection + batched log-softmax; one lane-dense
    #     (T, Vp) store instead of T single-sublane masked writebacks.
    #     (Pad vocab lanes carry -1e30 bias -> exp() == 0 in the denominator.)
    h_all = h_all_scr[...].astype(w_out_ref.dtype)
    logits = (jnp.dot(h_all, w_out_ref[...], preferred_element_type=jnp.float32)
              + b_out_ref[...])
    m = jnp.max(logits, axis=1, keepdims=True)
    shifted = logits - m
    lse = jnp.log(jnp.sum(jnp.exp(shifted), axis=1, keepdims=True))
    logp_ref[...] = shifted - lse


# ------------------------------ parameters -----------------------------------

def make_params(key, hidden=HIDDEN, vocab=VOCAB):
    ks = jax.random.split(key, 16)
    s = 1.0 / jnp.sqrt(hidden)
    u = lambda k, shape: jax.random.uniform(k, shape, jnp.float32, -s, s)
    return dict(
        emb=jax.random.normal(ks[0], (vocab, hidden), jnp.float32),
        w_ir=u(ks[1], (hidden, hidden)), w_iz=u(ks[2], (hidden, hidden)),
        w_in=u(ks[3], (hidden, hidden)),
        w_hr=u(ks[4], (hidden, hidden)), w_hz=u(ks[5], (hidden, hidden)),
        w_hn=u(ks[6], (hidden, hidden)),
        b_ir=u(ks[7], (1, hidden)), b_iz=u(ks[8], (1, hidden)),
        b_in=u(ks[9], (1, hidden)),
        b_hr=u(ks[10], (1, hidden)), b_hz=u(ks[11], (1, hidden)),
        b_hn=u(ks[12], (1, hidden)),
        w_out=u(ks[13], (hidden, vocab)), b_out=u(ks[14], (1, vocab)),
    )


def pack_params(P, weight_dtype=jnp.float32):
    """One-time packing outside the kernel:
      * pad hidden dim + each gate segment + vocab to a 128-lane boundary
        (no-op at the module default H=512),
      * pack the six gate weights/biases into (Hp, 3Hp) / (1, 3Hp),
      * matmul weights may be bf16 (recommended on v6e/v7x at H=512 / real
        vocab); biases and the -1e30 vocab-pad mask stay f32.
    Padded hidden lanes stay exactly zero through the GRU recurrence."""
    H = P["w_ir"].shape[0]
    V = P["emb"].shape[0]
    Hp = _round_up(H, LANE)
    Vp = _round_up(V, LANE)
    ph = Hp - H
    pw = lambda w: jnp.pad(w, ((0, ph), (0, ph)))          # (H,H) -> (Hp,Hp)
    pb = lambda b: jnp.pad(b, ((0, 0), (0, ph)))           # (1,H) -> (1,Hp)
    w_i = jnp.concatenate([pw(P["w_ir"]), pw(P["w_iz"]), pw(P["w_in"])], axis=1)
    w_h = jnp.concatenate([pw(P["w_hr"]), pw(P["w_hz"]), pw(P["w_hn"])], axis=1)
    b_i = jnp.concatenate([pb(P["b_ir"]), pb(P["b_iz"]), pb(P["b_in"])], axis=1)
    b_h = jnp.concatenate([pb(P["b_hr"]), pb(P["b_hz"]), pb(P["b_hn"])], axis=1)
    emb = jnp.pad(P["emb"], ((0, 0), (0, ph)))
    w_out = jnp.pad(P["w_out"], ((0, ph), (0, Vp - V)))
    b_out = jnp.pad(P["b_out"], ((0, 0), (0, Vp - V)), constant_values=-1e30)
    return dict(
        emb=emb.astype(weight_dtype),
        w_i=w_i.astype(weight_dtype), w_h=w_h.astype(weight_dtype),
        b_i=b_i.astype(jnp.float32), b_h=b_h.astype(jnp.float32),
        w_out=w_out.astype(weight_dtype), b_out=b_out.astype(jnp.float32),
        hidden=H, vocab=V, hidden_pad=Hp, vocab_pad=Vp,
    )


# ------------------------------- wrapper --------------------------------------

def _vmem_limit_bytes(required_bytes):
    """Generation-aware VMEM limit (128 MiB on v5e/v6e, 64 MiB on v7x)."""
    try:
        cap = int(pltpu.get_tpu_info().vmem_capacity_bytes)
    except Exception:
        cap = 64 << 20          # conservative fallback (v7x per-core VMEM)
    hi = int(0.75 * cap)
    return int(min(max(2 * required_bytes + (4 << 20), 16 << 20), hi))


def decoder_decode(tokens, hidden, PP):
    """Run T (teacher-forced) decoder steps in one kernel launch.

    tokens: (T,) int32; hidden: (1, 1, H) f32
    returns (logp (T, V), hidden (1, 1, H)); T=1 matches DecoderRNN.forward.
    """
    T = int(tokens.shape[0])
    H, V = PP["hidden"], PP["vocab"]
    Hp, Vp = PP["hidden_pad"], PP["vocab_pad"]

    # Embedding gather in the wrapper: one contiguous (T, Hp) operand, no
    # per-step single-row HBM DMAs. Clamp so the gather can never go OOB.
    tokens = jnp.clip(tokens.astype(jnp.int32), 0, V - 1)
    x_all = jnp.take(PP["emb"], tokens, axis=0)                        # (T, Hp)
    h0 = jnp.zeros((1, Hp), jnp.float32)
    h0 = h0.at[:, :H].set(hidden.reshape(1, H).astype(jnp.float32))

    operands = (x_all, h0, PP["w_i"], PP["w_h"], PP["b_i"], PP["b_h"],
                PP["w_out"], PP["b_out"])
    vmem = pl.BlockSpec(memory_space=pltpu.MemorySpace.VMEM)

    op_bytes = sum(int(a.size) * a.dtype.itemsize for a in operands)
    out_bytes = 4 * (T * Vp + Hp)
    scratch_bytes = 4 * (T * 3 * Hp + T * Hp)
    cost = pl.CostEstimate(
        flops=(2 * T * Hp * 3 * Hp          # hoisted input matmul
               + 2 * T * Hp * 3 * Hp        # recurrent matmuls
               + 2 * T * Hp * Vp),          # deferred output projection
        transcendentals=T * (3 * Hp + Vp),
        bytes_accessed=op_bytes + out_bytes,
    )
    # TODO(synk): for very large H*Vp on v7x (64 MiB VMEM), tile w_out over the
    # vocab axis with an online max/LSE instead of keeping it fully resident.

    logp, h_new = pl.pallas_call(
        decoder_kernel,
        out_shape=(jax.ShapeDtypeStruct((T, Vp), jnp.float32),
                   jax.ShapeDtypeStruct((1, Hp), jnp.float32)),
        in_specs=[vmem] * len(operands),
        out_specs=(vmem, vmem),
        scratch_shapes=[pltpu.VMEM((T, 3 * Hp), jnp.float32),
                        pltpu.VMEM((T, Hp), jnp.float32)],
        compiler_params=pltpu.CompilerParams(
            vmem_limit_bytes=_vmem_limit_bytes(op_bytes + out_bytes + scratch_bytes)),
        cost_estimate=cost,
    )(*operands)

    return logp[:, :V], h_new[:, :H].reshape(1, 1, H)


def decoder_forward(token, hidden, PP):
    """Single-step forward matching DecoderRNN.forward(input, hidden)."""
    logp, h_new = decoder_decode(token.reshape(1), hidden, PP)
    return logp, h_new


# ---------------- pure-JAX references (match the PyTorch module) ----------------

def decoder_forward_ref(token, hidden, P):
    x = jnp.maximum(P["emb"][token[0]][None, :], 0.0)
    h = hidden.reshape(1, HIDDEN)
    r = jax.nn.sigmoid(x @ P["w_ir"] + P["b_ir"] + h @ P["w_hr"] + P["b_hr"])
    z = jax.nn.sigmoid(x @ P["w_iz"] + P["b_iz"] + h @ P["w_hz"] + P["b_hz"])
    n = jnp.tanh(x @ P["w_in"] + P["b_in"] + r * (h @ P["w_hn"] + P["b_hn"]))
    h_new = (1.0 - z) * n + z * h
    logits = h_new @ P["w_out"] + P["b_out"]
    logp = logits - jax.scipy.special.logsumexp(logits, axis=1, keepdims=True)
    return logp, h_new.reshape(1, 1, HIDDEN)


def decoder_decode_ref(tokens, hidden, P):
    logps, h = [], hidden
    for t in range(tokens.shape[0]):
        logp, h = decoder_forward_ref(tokens[t:t + 1], h, P)
        logps.append(logp)
    return jnp.concatenate(logps, axis=0), h


if __name__ == "__main__":
    key = jax.random.PRNGKey(0)
    kp, kh, kt = jax.random.split(key, 3)
    params = make_params(kp)
    packed = pack_params(params)                     # f32 weights (exact vs ref)

    # --- single step (exactly the module's forward) ---
    token = jnp.array([5], dtype=jnp.int32)
    hidden = jax.random.normal(kh, (1, 1, HIDDEN), jnp.float32)
    logp, h_new = decoder_forward(token, hidden, packed)
    jax.block_until_ready((logp, h_new))
    logp_ref, h_ref = decoder_forward_ref(token, hidden, params)
    assert logp.shape == (1, VOCAB) and h_new.shape == (1, 1, HIDDEN)
    assert jnp.allclose(logp, logp_ref, atol=2e-5, rtol=2e-5)
    assert jnp.allclose(h_new, h_ref, atol=2e-5, rtol=2e-5)

    # --- multi-step teacher-forced decode: one launch, one kernel, M=T matmuls ---
    T = 8
    tokens = jax.random.randint(kt, (T,), 0, VOCAB, dtype=jnp.int32)
    logp_seq, h_seq = decoder_decode(tokens, hidden, packed)
    jax.block_until_ready((logp_seq, h_seq))
    logp_seq_ref, h_seq_ref = decoder_decode_ref(tokens, hidden, params)
    assert logp_seq.shape == (T, VOCAB) and h_seq.shape == (1, 1, HIDDEN)
    assert jnp.allclose(logp_seq, logp_seq_ref, atol=1e-4, rtol=1e-4)
    assert jnp.allclose(h_seq, h_seq_ref, atol=1e-4, rtol=1e-4)

    # --- bf16-weight variant (halves resident weight VMEM / HBM bytes; the
    #     recommended configuration for v6e/v7x at H=512 with a real vocab) ---
    packed_bf16 = pack_params(params, weight_dtype=jnp.bfloat16)
    logp_b, h_b = decoder_decode(tokens, hidden, packed_bf16)
    jax.block_until_ready((logp_b, h_b))
    assert logp_b.shape == (T, VOCAB) and h_b.shape == (1, 1, HIDDEN)
    assert bool(jnp.all(jnp.isfinite(logp_b)))

    print("KERNEL_OK")
</pallas_src>

<mosaic_0001>
module attributes {stable_mosaic.version = 11 : i64} {
  func.func @decoder_kernel(%arg0: memref<1x128xf32, #tpu.memory_space<vmem>>, %arg1: memref<1x128xf32, #tpu.memory_space<vmem>>, %arg2: memref<128x384xf32, #tpu.memory_space<vmem>>, %arg3: memref<128x384xf32, #tpu.memory_space<vmem>>, %arg4: memref<1x384xf32, #tpu.memory_space<vmem>>, %arg5: memref<1x384xf32, #tpu.memory_space<vmem>>, %arg6: memref<128x128xf32, #tpu.memory_space<vmem>>, %arg7: memref<1x128xf32, #tpu.memory_space<vmem>>, %arg8: memref<1x128xf32, #tpu.memory_space<vmem>>, %arg9: memref<1x128xf32, #tpu.memory_space<vmem>>, %arg10: memref<1x384xf32, #tpu.memory_space<vmem>>, %arg11: memref<1x128xf32, #tpu.memory_space<vmem>>) attributes {dimension_semantics = [], scalar_prefetch = 0 : i64, scratch_operands = 2 : i64, tpu.core_type = #tpu.core_type<tc>} {
    %c0 = arith.constant 0 : index
    %c0_0 = arith.constant 0 : index
    %0 = vector.load %arg0[%c0, %c0_0] : memref<1x128xf32, #tpu.memory_space<vmem>>, vector<1x128xf32>
    %cst = arith.constant 0.000000e+00 : f32
    %1 = vector.broadcast %cst : f32 to vector<1x128xf32>
    %2 = arith.maximumf %0, %1 : vector<1x128xf32>
    %c0_1 = arith.constant 0 : index
    %c0_2 = arith.constant 0 : index
    %3 = vector.load %arg2[%c0_1, %c0_2] : memref<128x384xf32, #tpu.memory_space<vmem>>, vector<128x384xf32>
    %cst_3 = arith.constant dense<0.000000e+00> : vector<1x384xf32>
    %4 = tpu.matmul %2, %3, %cst_3 {dimension_numbers = #tpu.dot_dimension_numbers<[1], [0], [0], [1], [0, 0, 1, 1], [], []>} : vector<1x128xf32>, vector<128x384xf32>, vector<1x384xf32> -> vector<1x384xf32>
    %c0_4 = arith.constant 0 : index
    %c0_5 = arith.constant 0 : index
    %5 = vector.load %arg4[%c0_4, %c0_5] : memref<1x384xf32, #tpu.memory_space<vmem>>, vector<1x384xf32>
    %6 = arith.addf %4, %5 : vector<1x384xf32>
    %c0_6 = arith.constant 0 : index
    %c0_7 = arith.constant 0 : index
    %7 = vector.load %arg10[%c0_6, %c0_7] : memref<1x384xf32, #tpu.memory_space<vmem>>, vector<1x384xf32>
    tpu.vector_store %arg10[%c0_6, %c0_7], %6 {strides = array<i32>} : memref<1x384xf32, #tpu.memory_space<vmem>>, vector<1x384xf32>,
    %c0_8 = arith.constant 0 : index
    %c0_9 = arith.constant 0 : index
    %8 = vector.load %arg3[%c0_8, %c0_9] : memref<128x384xf32, #tpu.memory_space<vmem>>, vector<128x384xf32>
    %c0_10 = arith.constant 0 : index
    %c0_11 = arith.constant 0 : index
    %9 = vector.load %arg5[%c0_10, %c0_11] : memref<1x384xf32, #tpu.memory_space<vmem>>, vector<1x384xf32>
    %c0_12 = arith.constant 0 : index
    %c0_13 = arith.constant 0 : index
    %10 = vector.load %arg1[%c0_12, %c0_13] : memref<1x128xf32, #tpu.memory_space<vmem>>, vector<1x128xf32>
    %c0_i32 = arith.constant 0 : i32
    %11 = arith.index_cast %c0_i32 : i32 to index
    %c0_14 = arith.constant 0 : index
    %12 = vector.load %arg10[%11, %c0_14] : memref<1x384xf32, #tpu.memory_space<vmem>>, vector<1x384xf32>
    %cst_15 = arith.constant dense<0.000000e+00> : vector<1x384xf32>
    %13 = tpu.matmul %10, %8, %cst_15 {dimension_numbers = #tpu.dot_dimension_numbers<[1], [0], [0], [1], [0, 0, 1, 1], [], []>} : vector<1x128xf32>, vector<128x384xf32>, vector<1x384xf32> -> vector<1x384xf32>
    %14 = arith.addf %13, %9 : vector<1x384xf32>
    %15 = vector.extract_strided_slice %12 {offsets = [0, 0], sizes = [1, 128], strides = [1, 1]} : vector<1x384xf32> to vector<1x128xf32>
    %16 = vector.extract_strided_slice %14 {offsets = [0, 0], sizes = [1, 128], strides = [1, 1]} : vector<1x384xf32> to vector<1x128xf32>
    %17 = arith.addf %15, %16 : vector<1x128xf32>
    %18 = arith.negf %17 : vector<1x128xf32>
    %19 = math.exp %18 : vector<1x128xf32>
    %cst_16 = arith.constant 1.000000e+00 : f32
    %20 = vector.broadcast %cst_16 : f32 to vector<1x128xf32>
    %21 = arith.addf %20, %19 : vector<1x128xf32>
    %22 = arith.divf %20, %21 : vector<1x128xf32>
    %23 = vector.extract_strided_slice %12 {offsets = [0, 128], sizes = [1, 128], strides = [1, 1]} : vector<1x384xf32> to vector<1x128xf32>
    %24 = vector.extract_strided_slice %14 {offsets = [0, 128], sizes = [1, 128], strides = [1, 1]} : vector<1x384xf32> to vector<1x128xf32>
    %25 = arith.addf %23, %24 : vector<1x128xf32>
    %26 = arith.negf %25 : vector<1x128xf32>
    %27 = math.exp %26 : vector<1x128xf32>
    %cst_17 = arith.constant 1.000000e+00 : f32
    %28 = vector.broadcast %cst_17 : f32 to vector<1x128xf32>
    %29 = arith.addf %28, %27 : vector<1x128xf32>
    %30 = arith.divf %28, %29 : vector<1x128xf32>
    %31 = vector.extract_strided_slice %12 {offsets = [0, 256], sizes = [1, 128], strides = [1, 1]} : vector<1x384xf32> to vector<1x128xf32>
    %32 = vector.extract_strided_slice %14 {offsets = [0, 256], sizes = [1, 128], strides = [1, 1]} : vector<1x384xf32> to vector<1x128xf32>
    %33 = arith.mulf %22, %32 : vector<1x128xf32>
    %34 = arith.addf %31, %33 : vector<1x128xf32>
    %35 = math.tanh %34 : vector<1x128xf32>
    %cst_18 = arith.constant 1.000000e+00 : f32
    %36 = vector.broadcast %cst_18 : f32 to vector<1x128xf32>
    %37 = arith.subf %36, %30 : vector<1x128xf32>
    %38 = arith.mulf %37, %35 : vector<1x128xf32>
    %39 = arith.mulf %30, %10 : vector<1x128xf32>
    %40 = arith.addf %38, %39 : vector<1x128xf32>
    %41 = arith.index_cast %c0_i32 : i32 to index
    %c0_19 = arith.constant 0 : index
    %42 = vector.load %arg11[%41, %c0_19] : memref<1x128xf32, #tpu.memory_space<vmem>>, vector<1x128xf32>
    tpu.vector_store %arg11[%41, %c0_19], %40 {strides = array<i32>} : memref<1x128xf32, #tpu.memory_space<vmem>>, vector<1x128xf32>,
    %c1_i32 = arith.constant 1 : i32
    %c0_20 = arith.constant 0 : index
    %c0_21 = arith.constant 0 : index
    %43 = vector.load %arg9[%c0_20, %c0_21] : memref<1x128xf32, #tpu.memory_space<vmem>>, vector<1x128xf32>
    tpu.vector_store %arg9[%c0_20, %c0_21], %40 {strides = array<i32>} : memref<1x128xf32, #tpu.memory_space<vmem>>, vector<1x128xf32>,
    %c0_22 = arith.constant 0 : index
    %c0_23 = arith.constant 0 : index
    %44 = vector.load %arg11[%c0_22, %c0_23] : memref<1x128xf32, #tpu.memory_space<vmem>>, vector<1x128xf32>
    %c0_24 = arith.constant 0 : index
    %c0_25 = arith.constant 0 : index
    %45 = vector.load %arg6[%c0_24, %c0_25] : memref<128x128xf32, #tpu.memory_space<vmem>>, vector<128x128xf32>
    %cst_26 = arith.constant dense<0.000000e+00> : vector<1x128xf32>
    %46 = tpu.matmul %44, %45, %cst_26 {dimension_numbers = #tpu.dot_dimension_numbers<[1], [0], [0], [1], [0, 0, 1, 1], [], []>} : vector<1x128xf32>, vector<128x128xf32>, vector<1x128xf32> -> vector<1x128xf32>
    %c0_27 = arith.constant 0 : index
    %c0_28 = arith.constant 0 : index
    %47 = vector.load %arg7[%c0_27, %c0_28] : memref<1x128xf32, #tpu.memory_space<vmem>>, vector<1x128xf32>
    %48 = arith.addf %46, %47 : vector<1x128xf32>
    %cst_29 = arith.constant dense<0xFF800000> : vector<1xf32>
    %49 = vector.multi_reduction <maximumf>, %48, %cst_29 [1] : vector<1x128xf32> to vector<1xf32>
    %50 = vector.shape_cast %49 : vector<1xf32> to vector<1x1xf32>
    %51 = vector.broadcast %50 : vector<1x1xf32> to vector<1x128xf32>
    %52 = arith.subf %48, %51 : vector<1x128xf32>
    %53 = math.exp %52 : vector<1x128xf32>
    %cst_30 = arith.constant dense<0.000000e+00> : vector<1xf32>
    %54 = vector.multi_reduction <add>, %53, %cst_30 [1] : vector<1x128xf32> to vector<1xf32>
    %55 = vector.shape_cast %54 : vector<1xf32> to vector<1x1xf32>
    %56 = math.log %55 : vector<1x1xf32>
    %57 = vector.broadcast %56 : vector<1x1xf32> to vector<1x128xf32>
    %58 = arith.subf %52, %57 : vector<1x128xf32>
    %c0_31 = arith.constant 0 : index
    %c0_32 = arith.constant 0 : index
    %59 = vector.load %arg8[%c0_31, %c0_32] : memref<1x128xf32, #tpu.memory_space<vmem>>, vector<1x128xf32>
    tpu.vector_store %arg8[%c0_31, %c0_32], %58 {strides = array<i32>} : memref<1x128xf32, #tpu.memory_space<vmem>>, vector<1x128xf32>,
    return
  }
}

</mosaic_0001>

<llo_original>
// kernel: tpu_custom_call.1
$region0: #{tpu_custom_call.1}
  #allocation0 [shape = 'u32[]', space=smem, size = 0x4, offset = 0x4, fixed_abs, tag = 'smem constant byte address 0x4 - core index']
  #allocation1 [shape = 'u32[144,128]{1,0:T(1,128)}', space=vmem, size = 0x12000, scoped, tag = 'internal scratch']
  #allocation2 [shape = 'f32[1,384]{1,0:T(1,128)}', space=vmem, size = 0x600, scoped, tag = 'scratch operand']
  #allocation3 [shape = 'f32[1,128]{1,0:T(1,128)}', space=vmem, size = 0x200, scoped, tag = 'scratch operand']
  %s0 = inlined_call_operand.hbm [shape: f32[1,128], index: 0, kind: input, shape index: {}]
  %s1 = inlined_call_operand.vmem [shape: f32[1,128], index: 1, kind: input, shape index: {}]
  %s2 = inlined_call_operand.hbm [shape: f32[128,384], index: 2, kind: input, shape index: {}]
  %s3 = inlined_call_operand.hbm [shape: f32[128,384], index: 3, kind: input, shape index: {}]
  %s4 = inlined_call_operand.vmem [shape: f32[1,384], index: 4, kind: input, shape index: {}]
  %s5 = inlined_call_operand.vmem [shape: f32[1,384], index: 5, kind: input, shape index: {}]
  %s6 = inlined_call_operand.hbm [shape: f32[128,128], index: 6, kind: input, shape index: {}]
  %s7 = inlined_call_operand.vmem [shape: f32[1,128], index: 7, kind: input, shape index: {}]
  %s8 = inlined_call_operand.hbm [shape: f32[1,128], index: 8, kind: output, shape index: {0}]
  %s9 = inlined_call_operand.hbm [shape: f32[1,128], index: 9, kind: output, shape index: {1}]
  %10 = xla_tuple %s8, %s9
  %s11 = sld [smem:[#allocation0]]
  $region66: #{tpu_custom_call.1} parent=0
    _
  %s13 = ssub.s32 1, %s11
  %s14 = scalar_select 0, %s13, %s11
  $region1: #{tpu_custom_call.1} parent=0
    #allocation4 [shape = 'u8[512]{0}', space=vmem, size = 0x400, scoped, tag = 'input window, operand 0, single buffered']
    #allocation5 [shape = 's32[1]{0}', space=sflag, size = 0x4, scoped, tag = 'scoped memory for tpu_custom_call.1']
    #allocation6 [shape = 's32[1]{0}', space=sflag, size = 0x4, scoped, tag = 'scoped memory for tpu_custom_call.1']
    #allocation7 [shape = 'u8[196608]{0}', space=vmem, size = 0x30000, scoped, tag = 'input window, operand 2, single buffered']
    #allocation8 [shape = 's32[1]{0}', space=sflag, size = 0x4, scoped, tag = 'scoped memory for tpu_custom_call.1']
    #allocation9 [shape = 'u8[196608]{0}', space=vmem, size = 0x30000, scoped, tag = 'input window, operand 3, single buffered']
    #allocation10 [shape = 'u8[65536]{0}', space=vmem, size = 0x10000, scoped, tag = 'input window, operand 6, single buffered']
    #allocation11 [shape = 's32[1]{0}', space=sflag, size = 0x4, scoped, tag = 'scoped memory for tpu_custom_call.1']
    #allocation12 [shape = 'u8[512]{0}', space=vmem, size = 0x400, scoped, tag = 'output window, operand 0, single buffered']
    #allocation13 [shape = 'u8[512]{0}', space=vmem, size = 0x400, scoped, tag = 'output window, operand 1, single buffered']
    #allocation14 [shape = 's32[1]{0}', space=sflag, size = 0x4, scoped, tag = 'scoped memory for tpu_custom_call.1']
    %15 = vsyncpa [#allocation5], 0
    %16 = vsyncpa [#allocation8], 0
    %17 = vsyncpa [#allocation11], 0
    %18 = vsyncpa [#allocation6], 0
    %19 = vsyncpa [#allocation14], 0
    // Predicated region
    $region2: #{tpu_custom_call.1} parent=1 // pred_check
      _
    $region3: #{tpu_custom_call.1} parent=1 // pred_check_branch
      %21 = sbr.rel (0) target = $region5
    $region4: #{tpu_custom_call.1} parent=1 // pred_region
      %s23 = ssub.s32 16, 16
      %24 = vsyncadd [#allocation5], %s23
      %s26 = sshll.u32 [#allocation4], 4
      %s27 = int_to_ptr.vmem [resolvable:$true] %s26
      %29 = dma.hbm_to_vmem [thread:$0]  %s0, 16, %s27, [#allocation5]
    $region5: #{tpu_custom_call.1} parent=1 // pred_fallthru
      _
    // Predicated region
    $region6: #{tpu_custom_call.1} parent=1 // pred_check
      _
    $region7: #{tpu_custom_call.1} parent=1 // pred_check_branch
      %31 = sbr.rel (0) target = $region9
    $region8: #{tpu_custom_call.1} parent=1 // pred_region
      _
    $region9: #{tpu_custom_call.1} parent=1 // pred_fallthru
      _
    // Predicated region
    $region10: #{tpu_custom_call.1} parent=1 // pred_check
      _
    $region11: #{tpu_custom_call.1} parent=1 // pred_check_branch
      %33 = sbr.rel (0) target = $region13
    $region12: #{tpu_custom_call.1} parent=1 // pred_region
      %s35 = ssub.s32 6144, 6144
      %36 = vsyncadd [#allocation8], %s35
      %s37 = sshll.u32 [#allocation7], 4
      %s38 = int_to_ptr.vmem [resolvable:$true] %s37
      %43 = dma.hbm_to_vmem [thread:$0]  %s2, 6144, %s38, [#allocation8], 384, 384, 24
    $region13: #{tpu_custom_call.1} parent=1 // pred_fallthru
      _
    // Predicated region
    $region14: #{tpu_custom_call.1} parent=1 // pred_check
      _
    $region15: #{tpu_custom_call.1} parent=1 // pred_check_branch
      %45 = sbr.rel (0) target = $region17
    $region16: #{tpu_custom_call.1} parent=1 // pred_region
      %s47 = ssub.s32 6144, 6144
      %48 = vsyncadd [#allocation8], %s47
      %s49 = sshll.u32 [#allocation9], 4
      %s50 = int_to_ptr.vmem [resolvable:$true] %s49
      %55 = dma.hbm_to_vmem [thread:$0]  %s3, 6144, %s50, [#allocation8], 384, 384, 24
    $region17: #{tpu_custom_call.1} parent=1 // pred_fallthru
      _
    // Predicated region
    $region18: #{tpu_custom_call.1} parent=1 // pred_check
      _
    $region19: #{tpu_custom_call.1} parent=1 // pred_check_branch
      %57 = sbr.rel (0) target = $region21
    $region20: #{tpu_custom_call.1} parent=1 // pred_region
      _
    $region21: #{tpu_custom_call.1} parent=1 // pred_fallthru
      _
    // Predicated region
    $region22: #{tpu_custom_call.1} parent=1 // pred_check
      _
    $region23: #{tpu_custom_call.1} parent=1 // pred_check_branch
      %59 = sbr.rel (0) target = $region25
    $region24: #{tpu_custom_call.1} parent=1 // pred_region
      _
    $region25: #{tpu_custom_call.1} parent=1 // pred_fallthru
      _
    // Predicated region
    $region26: #{tpu_custom_call.1} parent=1 // pred_check
      _
    $region27: #{tpu_custom_call.1} parent=1 // pred_check_branch
      %61 = sbr.rel (0) target = $region29
    $region28: #{tpu_custom_call.1} parent=1 // pred_region
      %s63 = ssub.s32 2048, 2048
      %64 = vsyncadd [#allocation11], %s63
      %s65 = sshll.u32 [#allocation10], 4
      %s66 = int_to_ptr.vmem [resolvable:$true] %s65
      %71 = dma.hbm_to_vmem [thread:$0]  %s6, 2048, %s66, [#allocation11], 128, 128, 8
    $region29: #{tpu_custom_call.1} parent=1 // pred_fallthru
      _
    // Predicated region
    $region30: #{tpu_custom_call.1} parent=1 // pred_check
      _
    $region31: #{tpu_custom_call.1} parent=1 // pred_check_branch
      %73 = sbr.rel (0) target = $region33
    $region32: #{tpu_custom_call.1} parent=1 // pred_region
      _
    $region33: #{tpu_custom_call.1} parent=1 // pred_fallthru
      _
    // Predicated region
    $region34: #{tpu_custom_call.1} parent=1 // pred_check
      _
    $region35: #{tpu_custom_call.1} parent=1 // pred_check_branch
      %75 = sbr.rel (0) target = $region37
    $region36: #{tpu_custom_call.1} parent=1 // pred_region
      %76 = dma.done [#allocation5], 16
    $region37: #{tpu_custom_call.1} parent=1 // pred_fallthru
      _
    // Predicated region
    $region38: #{tpu_custom_call.1} parent=1 // pred_check
      _
    $region39: #{tpu_custom_call.1} parent=1 // pred_check_branch
      %78 = sbr.rel (0) target = $region41
    $region40: #{tpu_custom_call.1} parent=1 // pred_region
      %79 = dma.done [#allocation8], 6144
    $region41: #{tpu_custom_call.1} parent=1 // pred_fallthru
      _
    // Predicated region
    $region42: #{tpu_custom_call.1} parent=1 // pred_check
      _
    $region43: #{tpu_custom_call.1} parent=1 // pred_check_branch
      %81 = sbr.rel (0) target = $region45
    $region44: #{tpu_custom_call.1} parent=1 // pred_region
      %82 = dma.done [#allocation8], 6144
    $region45: #{tpu_custom_call.1} parent=1 // pred_fallthru
      _
    // Predicated region
    $region46: #{tpu_custom_call.1} parent=1 // pred_check
      _
    $region47: #{tpu_custom_call.1} parent=1 // pred_check_branch
      %84 = sbr.rel (0) target = $region49
    $region48: #{tpu_custom_call.1} parent=1 // pred_region
      %85 = dma.done [#allocation11], 2048
    $region49: #{tpu_custom_call.1} parent=1 // pred_fallthru
      _
    %v86 = vld [vmem:[#allocation4] sm:$0x1]
    %v87 = vmax.f32 %v86, 0.0
    %v88 = vld [vmem:[#allocation7] sm:$0xff]
    %v89 = vld [vmem:[#allocation7 + $0x8] sm:$0xff]
    %v90 = vld [vmem:[#allocation7 + $0x10] sm:$0xff]
    %v91 = vld [vmem:[#allocation7 + $0x18] sm:$0xff]
    %v92 = vld [vmem:[#allocation7 + $0x20] sm:$0xff]
    %v93 = vld [vmem:[#allocation7 + $0x28] sm:$0xff]
    %v94 = vld [vmem:[#allocation7 + $0x30] sm:$0xff]
    %v95 = vld [vmem:[#allocation7 + $0x38] sm:$0xff]
    %v96 = vld [vmem:[#allocation7 + $0x40] sm:$0xff]
    %v97 = vld [vmem:[#allocation7 + $0x48] sm:$0xff]
    %v98 = vld [vmem:[#allocation7 + $0x50] sm:$0xff]
    %v99 = vld [vmem:[#allocation7 + $0x58] sm:$0xff]
    %v100 = vld [vmem:[#allocation7 + $0x60] sm:$0xff]
    %v101 = vld [vmem:[#allocation7 + $0x68] sm:$0xff]
    %v102 = vld [vmem:[#allocation7 + $0x70] sm:$0xff]
    %v103 = vld [vmem:[#allocation7 + $0x78] sm:$0xff]
    %v104 = vld [vmem:[#allocation7 + $0x80] sm:$0xff]
    %v105 = vld [vmem:[#allocation7 + $0x88] sm:$0xff]
    %v106 = vld [vmem:[#allocation7 + $0x90] sm:$0xff]
    %v107 = vld [vmem:[#allocation7 + $0x98] sm:$0xff]
    %v108 = vld [vmem:[#allocation7 + $0xa0] sm:$0xff]
    %v109 = vld [vmem:[#allocation7 + $0xa8] sm:$0xff]
    %v110 = vld [vmem:[#allocation7 + $0xb0] sm:$0xff]
    %v111 = vld [vmem:[#allocation7 + $0xb8] sm:$0xff]
    %v112 = vld [vmem:[#allocation7 + $0xc0] sm:$0xff]
    %v113 = vld [vmem:[#allocation7 + $0xc8] sm:$0xff]
    %v114 = vld [vmem:[#allocation7 + $0xd0] sm:$0xff]
    %v115 = vld [vmem:[#allocation7 + $0xd8] sm:$0xff]
    %v116 = vld [vmem:[#allocation7 + $0xe0] sm:$0xff]
    %v117 = vld [vmem:[#allocation7 + $0xe8] sm:$0xff]
    %v118 = vld [vmem:[#allocation7 + $0xf0] sm:$0xff]
    %v119 = vld [vmem:[#allocation7 + $0xf8] sm:$0xff]
    %v120 = vld [vmem:[#allocation7 + $0x100] sm:$0xff]
    %v121 = vld [vmem:[#allocation7 + $0x108] sm:$0xff]
    %v122 = vld [vmem:[#allocation7 + $0x110] sm:$0xff]
    %v123 = vld [vmem:[#allocation7 + $0x118] sm:$0xff]
    %v124 = vld [vmem:[#allocation7 + $0x120] sm:$0xff]
    %v125 = vld [vmem:[#allocation7 + $0x128] sm:$0xff]
    %v126 = vld [vmem:[#allocation7 + $0x130] sm:$0xff]
    %v127 = vld [vmem:[#allocation7 + $0x138] sm:$0xff]
    %v128 = vld [vmem:[#allocation7 + $0x140] sm:$0xff]
    %v129 = vld [vmem:[#allocation7 + $0x148] sm:$0xff]
    %v130 = vld [vmem:[#allocation7 + $0x150] sm:$0xff]
    %v131 = vld [vmem:[#allocation7 + $0x158] sm:$0xff]
    %v132 = vld [vmem:[#allocation7 + $0x160] sm:$0xff]
    %v133 = vld [vmem:[#allocation7 + $0x168] sm:$0xff]
    %v134 = vld [vmem:[#allocation7 + $0x170] sm:$0xff]
    %v135 = vld [vmem:[#allocation7 + $0x178] sm:$0xff]
    %v136 = vld [vmem:[%s4] sm:$0x7]
    %v138 = vlaneseq
    %v139 = vshrl.u32 %v138, 7
    %v140 = vsub.s32 0, %v139
    %v141 = vrot.slane %v136, %v140
    %v142 = vlaneseq
    %v143 = vshrl.u32 %v142, 7
    %v144 = vsub.s32 1, %v143
    %v145 = vrot.slane %v136, %v144
    %v146 = vlaneseq
    %v147 = vshrl.u32 %v146, 7
    %v148 = vsub.s32 2, %v147
    %v149 = vrot.slane %v136, %v148
    %153 = vmatprep.subr.mxu0 %v89
    %154 = vmatpush1.msra.mxu0 %v88
    %155 = vmatprep.subr.mxu0 %v92
    %156 = vmatpush1.msra.mxu0 %v91
    %157 = vmatprep.subr.mxu0 %v95
    %158 = vmatpush1.msra.mxu0 %v94
    %159 = vmatprep.subr.mxu0 %v98
    %160 = vmatpush1.msra.mxu0 %v97
    %161 = vmatprep.subr.mxu0 %v101
    %162 = vmatpush1.msra.mxu0 %v100
    %163 = vmatprep.subr.mxu0 %v104
    %164 = vmatpush1.msra.mxu0 %v103
    %165 = vmatprep.subr.mxu0 %v107
    %166 = vmatpush1.msra.mxu0 %v106
    %167 = vmatprep.subr.mxu0 %v110
    %168 = vmatpush1.msra.mxu0 %v109
    %169 = vmatprep.subr.mxu0 %v113
    %170 = vmatpush1.msra.mxu0 %v112
    %171 = vmatprep.subr.mxu0 %v116
    %172 = vmatpush1.msra.mxu0 %v115
    %173 = vmatprep.subr.mxu0 %v119
    %174 = vmatpush1.msra.mxu0 %v118
    %175 = vmatprep.subr.mxu0 %v122
    %176 = vmatpush1.msra.mxu0 %v121
    %177 = vmatprep.subr.mxu0 %v125
    %178 = vmatpush1.msra.mxu0 %v124
    %179 = vmatprep.subr.mxu0 %v128
    %180 = vmatpush1.msra.mxu0 %v127
    %181 = vmatprep.subr.mxu0 %v131
    %182 = vmatpush1.msra.mxu0 %v130
    %183 = vmatprep.subr.mxu0 %v134
    %184 = vmatpush1.msra.mxu0 %v133
    %185 = vmatprep.subr.mxu0 0.0
    %186 = vmatpush1.msra.mxu0 0.0
    %187 = vmatprep.subr.mxu0 0.0
    %188 = vmatpush1.msra.mxu0 0.0
    %189 = vmatprep.subr.mxu0 0.0
    %190 = vmatpush1.msra.mxu0 0.0
    %191 = vmatprep.subr.mxu0 0.0
    %192 = vmatpush1.msra.mxu0 0.0
    %193 = vmatprep.subr.mxu0 0.0
    %194 = vmatpush1.msra.mxu0 0.0
    %195 = vmatprep.subr.mxu0 0.0
    %196 = vmatpush1.msra.mxu0 0.0
    %197 = vmatprep.subr.mxu0 0.0
    %198 = vmatpush1.msra.mxu0 0.0
    %199 = vmatprep.subr.mxu0 0.0
    %200 = vmatpush1.msra.mxu0 0.0
    %201 = vmatprep.subr.mxu0 0.0
    %202 = vmatpush1.msra.mxu0 0.0
    %203 = vmatprep.subr.mxu0 0.0
    %204 = vmatpush1.msra.mxu0 0.0
    %205 = vmatprep.subr.mxu0 0.0
    %206 = vmatpush1.msra.mxu0 0.0
    %207 = vmatprep.subr.mxu0 0.0
    %208 = vmatpush1.msra.mxu0 0.0
    %209 = vmatprep.subr.mxu0 0.0
    %210 = vmatpush1.msra.mxu0 0.0
    %211 = vmatprep.subr.mxu0 0.0
    %212 = vmatpush1.msra.mxu0 0.0
    %213 = vmatprep.subr.mxu0 0.0
    %214 = vmatpush1.msra.mxu0 0.0
    %215 = vmatprep.subr.mxu0 0.0
    %216 = vmatpush1.msra.mxu0 0.0
    %217 = vmatprep.mubr.f32.mxu0 0.0
    %218 = vmatmul.mubr.f32.gmra.mrb[0].mxu0 %v87
    %v219 = vpop.f32.mrb[0].mxu0
    %v220 = vadd.f32 %v141, %v219
    %v221 = vpop.f32.mrb[0].mxu0
    %v222 = vadd.f32 %v145, %v221
    %223 = vdwg.mxu0
    %224 = vmatprep.subr.mxu0 0.0
    %225 = vmatpush1.msra.mxu0 %v90
    %226 = vmatprep.subr.mxu0 0.0
    %227 = vmatpush1.msra.mxu0 %v93
    %228 = vmatprep.subr.mxu0 0.0
    %229 = vmatpush1.msra.mxu0 %v96
    %230 = vmatprep.subr.mxu0 0.0
    %231 = vmatpush1.msra.mxu0 %v99
    %232 = vmatprep.subr.mxu0 0.0
    %233 = vmatpush1.msra.mxu0 %v102
    %234 = vmatprep.subr.mxu0 0.0
    %235 = vmatpush1.msra.mxu0 %v105
    %236 = vmatprep.subr.mxu0 0.0
    %237 = vmatpush1.msra.mxu0 %v108
    %238 = vmatprep.subr.mxu0 0.0
    %239 = vmatpush1.msra.mxu0 %v111
    %240 = vmatprep.subr.mxu0 0.0
    %241 = vmatpush1.msra.mxu0 %v114
    %242 = vmatprep.subr.mxu0 0.0
    %243 = vmatpush1.msra.mxu0 %v117
    %244 = vmatprep.subr.mxu0 0.0
    %245 = vmatpush1.msra.mxu0 %v120
    %246 = vmatprep.subr.mxu0 0.0
    %247 = vmatpush1.msra.mxu0 %v123
    %248 = vmatprep.subr.mxu0 0.0
    %249 = vmatpush1.msra.mxu0 %v126
    %250 = vmatprep.subr.mxu0 0.0
    %251 = vmatpush1.msra.mxu0 %v129
    %252 = vmatprep.subr.mxu0 0.0
    %253 = vmatpush1.msra.mxu0 %v132
    %254 = vmatprep.subr.mxu0 0.0
    %255 = vmatpush1.msra.mxu0 %v135
    %256 = vmatprep.subr.mxu0 0.0
    %257 = vmatpush1.msra.mxu0 0.0
    %258 = vmatprep.subr.mxu0 0.0
    %259 = vmatpush1.msra.mxu0 0.0
    %260 = vmatprep.subr.mxu0 0.0
    %261 = vmatpush1.msra.mxu0 0.0
    %262 = vmatprep.subr.mxu0 0.0
    %263 = vmatpush1.msra.mxu0 0.0
    %264 = vmatprep.subr.mxu0 0.0
    %265 = vmatpush1.msra.mxu0 0.0
    %266 = vmatprep.subr.mxu0 0.0
    %267 = vmatpush1.msra.mxu0 0.0
    %268 = vmatprep.subr.mxu0 0.0
    %269 = vmatpush1.msra.mxu0 0.0
    %270 = vmatprep.subr.mxu0 0.0
    %271 = vmatpush1.msra.mxu0 0.0
    %272 = vmatprep.subr.mxu0 0.0
    %273 = vmatpush1.msra.mxu0 0.0
    %274 = vmatprep.subr.mxu0 0.0
    %275 = vmatpush1.msra.mxu0 0.0
    %276 = vmatprep.subr.mxu0 0.0
    %277 = vmatpush1.msra.mxu0 0.0
    %278 = vmatprep.subr.mxu0 0.0
    %279 = vmatpush1.msra.mxu0 0.0
    %280 = vmatprep.subr.mxu0 0.0
    %281 = vmatpush1.msra.mxu0 0.0
    %282 = vmatprep.subr.mxu0 0.0
    %283 = vmatpush1.msra.mxu0 0.0
    %284 = vmatprep.subr.mxu0 0.0
    %285 = vmatpush1.msra.mxu0 0.0
    %286 = vmatprep.subr.mxu0 0.0
    %287 = vmatpush1.msra.mxu0 0.0
    %288 = vmatprep.mubr.f32.mxu0 0.0
    %289 = vmatmul.mubr.f32.gmra.mrb[0].mxu0 %v87
    %v290 = vpop.f32.mrb[0].mxu0
    %v291 = vadd.f32 %v149, %v290
    %v292 = vpop.f32.mrb[0].mxu0
    %293 = vdwg.mxu0
    %v297 = vcombine.low %v220, %v222
    %v299 = vunpack.c.l.s4 1966171168
    %v300 = vunpack.c.0.s8 %v299
    %v301 = vlaneseq
    %v302 = vshrl.u32 %v301, 7
    %v303 = vsub.s32 %v300, %v302
    %v304 = vrot.slane %v297, %v303
    %v306 = vunpack.c.l.s4 1966171168
    %v307 = vunpack.c.0.s8 %v306
    %v308 = vlaneseq
    %v309 = vshrl.u32 %v308, 7
    %v310 = vsub.s32 %v307, %v309
    %v311 = vrot.slane %v291, %v310
    %v312 = vcombine.low %v304, %v311
    %v314 = vunpack.c.l.s4 1966171168
    %v315 = vunpack.c.0.s8 %v314
    %v316 = vlaneseq
    %v317 = vshrl.u32 %v316, 7
    %v318 = vsub.s32 %v315, %v317
    %v319 = vrot.slane %v312, %v318
    %v321 = vlaneseq
    %vm322 = vcmp.ge.s32.totalorder %v321, 0
    %vm323 = vcmp.lt.s32.totalorder %v321, 384
    %vm324 = vmand %vm322, %vm323
    %325 = vst.msk [vmem:[#allocation2] sm:$0x7] %vm324, %v319
    %v326 = vld [vmem:[#allocation9] sm:$0xff]
    %v327 = vld [vmem:[#allocation9 + $0x8] sm:$0xff]
    %v328 = vld [vmem:[#allocation9 + $0x10] sm:$0xff]
    %v329 = vld [vmem:[#allocation9 + $0x18] sm:$0xff]
    %v330 = vld [vmem:[#allocation9 + $0x20] sm:$0xff]
    %v331 = vld [vmem:[#allocation9 + $0x28] sm:$0xff]
    %v332 = vld [vmem:[#allocation9 + $0x30] sm:$0xff]
    %v333 = vld [vmem:[#allocation9 + $0x38] sm:$0xff]
    %v334 = vld [vmem:[#allocation9 + $0x40] sm:$0xff]
    %v335 = vld [vmem:[#allocation9 + $0x48] sm:$0xff]
    %v336 = vld [vmem:[#allocation9 + $0x50] sm:$0xff]
    %v337 = vld [vmem:[#allocation9 + $0x58] sm:$0xff]
    %v338 = vld [vmem:[#allocation9 + $0x60] sm:$0xff]
    %v339 = vld [vmem:[#allocation9 + $0x68] sm:$0xff]
    %v340 = vld [vmem:[#allocation9 + $0x70] sm:$0xff]
    %v341 = vld [vmem:[#allocation9 + $0x78] sm:$0xff]
    %v342 = vld [vmem:[#allocation9 + $0x80] sm:$0xff]
    %v343 = vld [vmem:[#allocation9 + $0x88] sm:$0xff]
    %v344 = vld [vmem:[#allocation9 + $0x90] sm:$0xff]
    %v345 = vld [vmem:[#allocation9 + $0x98] sm:$0xff]
    %v346 = vld [vmem:[#allocation9 + $0xa0] sm:$0xff]
    %v347 = vld [vmem:[#allocation9 + $0xa8] sm:$0xff]
    %v348 = vld [vmem:[#allocation9 + $0xb0] sm:$0xff]
    %v349 = vld [vmem:[#allocation9 + $0xb8] sm:$0xff]
    %v350 = vld [vmem:[#allocation9 + $0xc0] sm:$0xff]
    %v351 = vld [vmem:[#allocation9 + $0xc8] sm:$0xff]
    %v352 = vld [vmem:[#allocation9 + $0xd0] sm:$0xff]
    %v353 = vld [vmem:[#allocation9 + $0xd8] sm:$0xff]
    %v354 = vld [vmem:[#allocation9 + $0xe0] sm:$0xff]
    %v355 = vld [vmem:[#allocation9 + $0xe8] sm:$0xff]
    %v356 = vld [vmem:[#allocation9 + $0xf0] sm:$0xff]
    %v357 = vld [vmem:[#allocation9 + $0xf8] sm:$0xff]
    %v358 = vld [vmem:[#allocation9 + $0x100] sm:$0xff]
    %v359 = vld [vmem:[#allocation9 + $0x108] sm:$0xff]
    %v360 = vld [vmem:[#allocation9 + $0x110] sm:$0xff]
    %v361 = vld [vmem:[#allocation9 + $0x118] sm:$0xff]
    %v362 = vld [vmem:[#allocation9 + $0x120] sm:$0xff]
    %v363 = vld [vmem:[#allocation9 + $0x128] sm:$0xff]
    %v364 = vld [vmem:[#allocation9 + $0x130] sm:$0xff]
    %v365 = vld [vmem:[#allocation9 + $0x138] sm:$0xff]
    %v366 = vld [vmem:[#allocation9 + $0x140] sm:$0xff]
    %v367 = vld [vmem:[#allocation9 + $0x148] sm:$0xff]
    %v368 = vld [vmem:[#allocation9 + $0x150] sm:$0xff]
    %v369 = vld [vmem:[#allocation9 + $0x158] sm:$0xff]
    %v370 = vld [vmem:[#allocation9 + $0x160] sm:$0xff]
    %v371 = vld [vmem:[#allocation9 + $0x168] sm:$0xff]
    %v372 = vld [vmem:[#allocation9 + $0x170] sm:$0xff]
    %v373 = vld [vmem:[#allocation9 + $0x178] sm:$0xff]
    %v374 = vld [vmem:[%s5] sm:$0x7]
    %v375 = vld [vmem:[%s1] sm:$0x1]
    %v376 = vld [vmem:[#allocation2] sm:$0x7]
    %v378 = vlaneseq
    %v379 = vshrl.u32 %v378, 7
    %v380 = vsub.s32 0, %v379
    %v381 = vrot.slane %v374, %v380
    %v382 = vlaneseq
    %v383 = vshrl.u32 %v382, 7
    %v384 = vsub.s32 1, %v383
    %v385 = vrot.slane %v374, %v384
    %v386 = vlaneseq
    %v387 = vshrl.u32 %v386, 7
    %v388 = vsub.s32 2, %v387
    %v389 = vrot.slane %v374, %v388
    %393 = vmatprep.subr.mxu0 %v327
    %394 = vmatpush1.msra.mxu0 %v326
    %395 = vmatprep.subr.mxu0 %v330
    %396 = vmatpush1.msra.mxu0 %v329
    %397 = vmatprep.subr.mxu0 %v333
    %398 = vmatpush1.msra.mxu0 %v332
    %399 = vmatprep.subr.mxu0 %v336
    %400 = vmatpush1.msra.mxu0 %v335
    %401 = vmatprep.subr.mxu0 %v339
    %402 = vmatpush1.msra.mxu0 %v338
    %403 = vmatprep.subr.mxu0 %v342
    %404 = vmatpush1.msra.mxu0 %v341
    %405 = vmatprep.subr.mxu0 %v345
    %406 = vmatpush1.msra.mxu0 %v344
    %407 = vmatprep.subr.mxu0 %v348
    %408 = vmatpush1.msra.mxu0 %v347
    %409 = vmatprep.subr.mxu0 %v351
    %410 = vmatpush1.msra.mxu0 %v350
    %411 = vmatprep.subr.mxu0 %v354
    %412 = vmatpush1.msra.mxu0 %v353
    %413 = vmatprep.subr.mxu0 %v357
    %414 = vmatpush1.msra.mxu0 %v356
    %415 = vmatprep.subr.mxu0 %v360
    %416 = vmatpush1.msra.mxu0 %v359
    %417 = vmatprep.subr.mxu0 %v363
    %418 = vmatpush1.msra.mxu0 %v362
    %419 = vmatprep.subr.mxu0 %v366
    %420 = vmatpush1.msra.mxu0 %v365
    %421 = vmatprep.subr.mxu0 %v369
    %422 = vmatpush1.msra.mxu0 %v368
    %423 = vmatprep.subr.mxu0 %v372
    %424 = vmatpush1.msra.mxu0 %v371
    %425 = vmatprep.subr.mxu0 0.0
    %426 = vmatpush1.msra.mxu0 0.0
    %427 = vmatprep.subr.mxu0 0.0
    %428 = vmatpush1.msra.mxu0 0.0
    %429 = vmatprep.subr.mxu0 0.0
    %430 = vmatpush1.msra.mxu0 0.0
    %431 = vmatprep.subr.mxu0 0.0
    %432 = vmatpush1.msra.mxu0 0.0
    %433 = vmatprep.subr.mxu0 0.0
    %434 = vmatpush1.msra.mxu0 0.0
    %435 = vmatprep.subr.mxu0 0.0
    %436 = vmatpush1.msra.mxu0 0.0
    %437 = vmatprep.subr.mxu0 0.0
    %438 = vmatpush1.msra.mxu0 0.0
    %439 = vmatprep.subr.mxu0 0.0
    %440 = vmatpush1.msra.mxu0 0.0
    %441 = vmatprep.subr.mxu0 0.0
    %442 = vmatpush1.msra.mxu0 0.0
    %443 = vmatprep.subr.mxu0 0.0
    %444 = vmatpush1.msra.mxu0 0.0
    %445 = vmatprep.subr.mxu0 0.0
    %446 = vmatpush1.msra.mxu0 0.0
    %447 = vmatprep.subr.mxu0 0.0
    %448 = vmatpush1.msra.mxu0 0.0
    %449 = vmatprep.subr.mxu0 0.0
    %450 = vmatpush1.msra.mxu0 0.0
    %451 = vmatprep.subr.mxu0 0.0
    %452 = vmatpush1.msra.mxu0 0.0
    %453 = vmatprep.subr.mxu0 0.0
    %454 = vmatpush1.msra.mxu0 0.0
    %455 = vmatprep.subr.mxu0 0.0
    %456 = vmatpush1.msra.mxu0 0.0
    %457 = vmatprep.mubr.f32.mxu0 0.0
    %458 = vmatmul.mubr.f32.gmra.mrb[0].mxu0 %v375
    %v459 = vpop.f32.mrb[0].mxu0
    %v460 = vadd.f32 %v381, %v459
    %v461 = vpop.f32.mrb[0].mxu0
    %v462 = vadd.f32 %v385, %v461
    %463 = vdwg.mxu0
    %464 = vmatprep.subr.mxu0 0.0
    %465 = vmatpush1.msra.mxu0 %v328
    %466 = vmatprep.subr.mxu0 0.0
    %467 = vmatpush1.msra.mxu0 %v331
    %468 = vmatprep.subr.mxu0 0.0
    %469 = vmatpush1.msra.mxu0 %v334
    %470 = vmatprep.subr.mxu0 0.0
    %471 = vmatpush1.msra.mxu0 %v337
    %472 = vmatprep.subr.mxu0 0.0
    %473 = vmatpush1.msra.mxu0 %v340
    %474 = vmatprep.subr.mxu0 0.0
    %475 = vmatpush1.msra.mxu0 %v343
    %476 = vmatprep.subr.mxu0 0.0
    %477 = vmatpush1.msra.mxu0 %v346
    %478 = vmatprep.subr.mxu0 0.0
    %479 = vmatpush1.msra.mxu0 %v349
    %480 = vmatprep.subr.mxu0 0.0
    %481 = vmatpush1.msra.mxu0 %v352
    %482 = vmatprep.subr.mxu0 0.0
    %483 = vmatpush1.msra.mxu0 %v355
    %484 = vmatprep.subr.mxu0 0.0
    %485 = vmatpush1.msra.mxu0 %v358
    %486 = vmatprep.subr.mxu0 0.0
    %487 = vmatpush1.msra.mxu0 %v361
    %488 = vmatprep.subr.mxu0 0.0
    %489 = vmatpush1.msra.mxu0 %v364
    %490 = vmatprep.subr.mxu0 0.0
    %491 = vmatpush1.msra.mxu0 %v367
    %492 = vmatprep.subr.mxu0 0.0
    %493 = vmatpush1.msra.mxu0 %v370
    %494 = vmatprep.subr.mxu0 0.0
    %495 = vmatpush1.msra.mxu0 %v373
    %496 = vmatprep.subr.mxu0 0.0
    %497 = vmatpush1.msra.mxu0 0.0
    %498 = vmatprep.subr.mxu0 0.0
    %499 = vmatpush1.msra.mxu0 0.0
    %500 = vmatprep.subr.mxu0 0.0
    %501 = vmatpush1.msra.mxu0 0.0
    %502 = vmatprep.subr.mxu0 0.0
    %503 = vmatpush1.msra.mxu0 0.0
    %504 = vmatprep.subr.mxu0 0.0
    %505 = vmatpush1.msra.mxu0 0.0
    %506 = vmatprep.subr.mxu0 0.0
    %507 = vmatpush1.msra.mxu0 0.0
    %508 = vmatprep.subr.mxu0 0.0
    %509 = vmatpush1.msra.mxu0 0.0
    %510 = vmatprep.subr.mxu0 0.0
    %511 = vmatpush1.msra.mxu0 0.0
    %512 = vmatprep.subr.mxu0 0.0
    %513 = vmatpush1.msra.mxu0 0.0
    %514 = vmatprep.subr.mxu0 0.0
    %515 = vmatpush1.msra.mxu0 0.0
    %516 = vmatprep.subr.mxu0 0.0
    %517 = vmatpush1.msra.mxu0 0.0
    %518 = vmatprep.subr.mxu0 0.0
    %519 = vmatpush1.msra.mxu0 0.0
    %520 = vmatprep.subr.mxu0 0.0
    %521 = vmatpush1.msra.mxu0 0.0
    %522 = vmatprep.subr.mxu0 0.0
    %523 = vmatpush1.msra.mxu0 0.0
    %524 = vmatprep.subr.mxu0 0.0
    %525 = vmatpush1.msra.mxu0 0.0
    %526 = vmatprep.subr.mxu0 0.0
    %527 = vmatpush1.msra.mxu0 0.0
    %528 = vmatprep.mubr.f32.mxu0 0.0
    %529 = vmatmul.mubr.f32.gmra.mrb[0].mxu0 %v375
    %v530 = vpop.f32.mrb[0].mxu0
    %v531 = vadd.f32 %v389, %v530
    %v532 = vpop.f32.mrb[0].mxu0
    %533 = vdwg.mxu0
    %v534 = vadd.f32 %v376, %v460
    %v535 = vxor.u32 %v534, 2147483648
    %v536 = vmul.f32 %v535, 1.442695
    %v537 = vpow.pop %v536
    %v538 = vadd.f32 %v537, 1.0
    %v539 = vrcp.pop %v538
    %v540 = vmul.f32 1.0, %v539
    %v542 = vrot.slane %v376, 1
    %v544 = vadd.f32 %v542, %v462
    %v545 = vxor.u32 %v544, 2147483648
    %v546 = vmul.f32 %v545, 1.442695
    %v547 = vpow.pop %v546
    %v548 = vadd.f32 %v547, 1.0
    %v549 = vrcp.pop %v548
    %v550 = vmul.f32 1.0, %v549
    %v551 = vmul.f32 %v540, %v531
    %v552 = vrot.slane %v376, 2
    %v554 = vadd.f32 %v552, %v551
    %v555 = vtanh.pop %v554
    %v556 = vsub.f32 1.0, %v550
    %v557 = vmul.f32 %v556, %v555
    %v558 = vmul.f32 %v550, %v375
    %v559 = vadd.f32 %v557, %v558
    %560 = vst [vmem:[#allocation3] sm:$0x1] %v559
    %561 = vst [vmem:[#allocation13] sm:$0x1] %v559
    %v562 = vld [vmem:[#allocation3] sm:$0x1]
    %v563 = vld [vmem:[#allocation10] sm:$0xff]
    %v564 = vld [vmem:[#allocation10 + $0x8] sm:$0xff]
    %v565 = vld [vmem:[#allocation10 + $0x10] sm:$0xff]
    %v566 = vld [vmem:[#allocation10 + $0x18] sm:$0xff]
    %v567 = vld [vmem:[#allocation10 + $0x20] sm:$0xff]
    %v568 = vld [vmem:[#allocation10 + $0x28] sm:$0xff]
    %v569 = vld [vmem:[#allocation10 + $0x30] sm:$0xff]
    %v570 = vld [vmem:[#allocation10 + $0x38] sm:$0xff]
    %v571 = vld [vmem:[#allocation10 + $0x40] sm:$0xff]
    %v572 = vld [vmem:[#allocation10 + $0x48] sm:$0xff]
    %v573 = vld [vmem:[#allocation10 + $0x50] sm:$0xff]
    %v574 = vld [vmem:[#allocation10 + $0x58] sm:$0xff]
    %v575 = vld [vmem:[#allocation10 + $0x60] sm:$0xff]
    %v576 = vld [vmem:[#allocation10 + $0x68] sm:$0xff]
    %v577 = vld [vmem:[#allocation10 + $0x70] sm:$0xff]
    %v578 = vld [vmem:[#allocation10 + $0x78] sm:$0xff]
    %v579 = vld [vmem:[%s7] sm:$0x1]
    %580 = vmatprep.subr.mxu0 0.0
    %581 = vmatpush1.msra.mxu0 %v563
    %582 = vmatprep.subr.mxu0 0.0
    %583 = vmatpush1.msra.mxu0 %v564
    %584 = vmatprep.subr.mxu0 0.0
    %585 = vmatpush1.msra.mxu0 %v565
    %586 = vmatprep.subr.mxu0 0.0
    %587 = vmatpush1.msra.mxu0 %v566
    %588 = vmatprep.subr.mxu0 0.0
    %589 = vmatpush1.msra.mxu0 %v567
    %590 = vmatprep.subr.mxu0 0.0
    %591 = vmatpush1.msra.mxu0 %v568
    %592 = vmatprep.subr.mxu0 0.0
    %593 = vmatpush1.msra.mxu0 %v569
    %594 = vmatprep.subr.mxu0 0.0
    %595 = vmatpush1.msra.mxu0 %v570
    %596 = vmatprep.subr.mxu0 0.0
    %597 = vmatpush1.msra.mxu0 %v571
    %598 = vmatprep.subr.mxu0 0.0
    %599 = vmatpush1.msra.mxu0 %v572
    %600 = vmatprep.subr.mxu0 0.0
    %601 = vmatpush1.msra.mxu0 %v573
    %602 = vmatprep.subr.mxu0 0.0
    %603 = vmatpush1.msra.mxu0 %v574
    %604 = vmatprep.subr.mxu0 0.0
    %605 = vmatpush1.msra.mxu0 %v575
    %606 = vmatprep.subr.mxu0 0.0
    %607 = vmatpush1.msra.mxu0 %v576
    %608 = vmatprep.subr.mxu0 0.0
    %609 = vmatpush1.msra.mxu0 %v577
    %610 = vmatprep.subr.mxu0 0.0
    %611 = vmatpush1.msra.mxu0 %v578
    %612 = vmatprep.subr.mxu0 0.0
    %613 = vmatpush1.msra.mxu0 0.0
    %614 = vmatprep.subr.mxu0 0.0
    %615 = vmatpush1.msra.mxu0 0.0
    %616 = vmatprep.subr.mxu0 0.0
    %617 = vmatpush1.msra.mxu0 0.0
    %618 = vmatprep.subr.mxu0 0.0
    %619 = vmatpush1.msra.mxu0 0.0
    %620 = vmatprep.subr.mxu0 0.0
    %621 = vmatpush1.msra.mxu0 0.0
    %622 = vmatprep.subr.mxu0 0.0
    %623 = vmatpush1.msra.mxu0 0.0
    %624 = vmatprep.subr.mxu0 0.0
    %625 = vmatpush1.msra.mxu0 0.0
    %626 = vmatprep.subr.mxu0 0.0
    %627 = vmatpush1.msra.mxu0 0.0
    %628 = vmatprep.subr.mxu0 0.0
    %629 = vmatpush1.msra.mxu0 0.0
    %630 = vmatprep.subr.mxu0 0.0
    %631 = vmatpush1.msra.mxu0 0.0
    %632 = vmatprep.subr.mxu0 0.0
    %633 = vmatpush1.msra.mxu0 0.0
    %634 = vmatprep.subr.mxu0 0.0
    %635 = vmatpush1.msra.mxu0 0.0
    %636 = vmatprep.subr.mxu0 0.0
    %637 = vmatpush1.msra.mxu0 0.0
    %638 = vmatprep.subr.mxu0 0.0
    %639 = vmatpush1.msra.mxu0 0.0
    %640 = vmatprep.subr.mxu0 0.0
    %641 = vmatpush1.msra.mxu0 0.0
    %642 = vmatprep.subr.mxu0 0.0
    %643 = vmatpush1.msra.mxu0 0.0
    %644 = vmatprep.mubr.f32.mxu0 0.0
    %645 = vmatmul.mubr.f32.gmra.mrb[0].mxu0 %v562
    %v646 = vpop.f32.mrb[0].mxu0
    %v647 = vadd.f32 %v579, %v646
    %v648 = vpop.f32.mrb[0].mxu0
    %649 = vdwg.mxu0
    %vm650 = vcmask 1040384
    %v651 = vsel %vm650, %v647, -inf
    %652 = vmax.xlane.f32.xlu0 %v651
    %v653 = vpop.xlane.xlu0 %652
    %v654 = vsub.f32 %v647, %v653
    %v655 = vmul.f32 %v654, 1.442695
    %v656 = vpow.pop %v655
    %v657 = vsel %vm650, %v656, 0.0
    %658 = vadd.xlane.f32.xlu0 %v657
    %v659 = vpop.xlane.xlu0 %658
    %v660 = vlog2.pop %v659
    %v661 = vmul.f32 %v660, 0.6931472
    %v662 = vsub.f32 %v654, %v661
    %663 = vst [vmem:[#allocation12] sm:$0x1] %v662
    // Predicated region
    $region50: #{tpu_custom_call.1} parent=1 // pred_check
      _
    $region51: #{tpu_custom_call.1} parent=1 // pred_check_branch
      %665 = sbr.rel (0) target = $region53
    $region52: #{tpu_custom_call.1} parent=1 // pred_region
      %s667 = ssub.s32 16, 16
      %668 = vsyncadd [#allocation6], %s667
      %s670 = sshll.u32 [#allocation12], 4
      %s671 = int_to_ptr.vmem [resolvable:$true] %s670
      %673 = dma.vmem_to_hbm [thread:$0]  %s671, 16, %s8, [#allocation6]
    $region53: #{tpu_custom_call.1} parent=1 // pred_fallthru
      _
    // Predicated region
    $region54: #{tpu_custom_call.1} parent=1 // pred_check
      _
    $region55: #{tpu_custom_call.1} parent=1 // pred_check_branch
      %675 = sbr.rel (0) target = $region57
    $region56: #{tpu_custom_call.1} parent=1 // pred_region
      %s677 = ssub.s32 16, 16
      %678 = vsyncadd [#allocation14], %s677
      %s680 = sshll.u32 [#allocation13], 4
      %s681 = int_to_ptr.vmem [resolvable:$true] %s680
      %683 = dma.vmem_to_hbm [thread:$0]  %s681, 16, %s9, [#allocation14]
    $region57: #{tpu_custom_call.1} parent=1 // pred_fallthru
      _
    // Predicated region
    $region58: #{tpu_custom_call.1} parent=1 // pred_check
      _
    $region59: #{tpu_custom_call.1} parent=1 // pred_check_branch
      %685 = sbr.rel (0) target = $region61
    $region60: #{tpu_custom_call.1} parent=1 // pred_region
      %686 = dma.done [#allocation6], 16
    $region61: #{tpu_custom_call.1} parent=1 // pred_fallthru
      _
    // Predicated region
    $region62: #{tpu_custom_call.1} parent=1 // pred_check
      _
    $region63: #{tpu_custom_call.1} parent=1 // pred_check_branch
      %688 = sbr.rel (0) target = $region65
    $region64: #{tpu_custom_call.1} parent=1 // pred_region
      %689 = dma.done [#allocation14], 16
    $region65: #{tpu_custom_call.1} parent=1 // pred_fallthru
      _
    %690 = vsyncpa [#allocation5], 1
    %691 = vsyncpa [#allocation8], 1
    %692 = vsyncpa [#allocation11], 1
    %693 = vsyncpa [#allocation6], 1
    %694 = vsyncpa [#allocation14], 1

</llo_original>
